<compile_context>
chip_gen: v7x
topology: tpu7x:2x2x1
jax: 0.10.0
libtpu: 0.0.40
codegen_flags: <defaults>
</compile_context>

<pallas_src>
import jax
import jax.numpy as jnp
from jax.experimental import pallas as pl
from jax.experimental.pallas import tpu as pltpu


_TARGET_STEP_BYTES = 1 << 20   # ~1 MiB of input (logits + labels) per grid step


# ---------------------------------------------------------------------------
# Kernels
# ---------------------------------------------------------------------------

def _l1loss_softmax_kernel(x_ref, t_ref, out_ref):
    """n_classes > 1 path.

    x_ref  : (TB, C, T) logits tile
    t_ref  : (TB, 1, T) int32 class labels (-1 for padded pixels)
    out_ref: (1, 1, 1, 1) f32 partial: sum over the tile of p_target
    """
    x = x_ref[...].astype(jnp.float32)                   # (TB, C, T)
    t = t_ref[...]                                       # (TB, 1, T) int32

    # numerically stable softmax pieces over the channel axis
    m = jnp.max(x, axis=1, keepdims=True)                # (TB, 1, T)
    e = jnp.exp(x - m)                                   # (TB, C, T)  EUP
    denom = jnp.sum(e, axis=1, keepdims=True)            # (TB, 1, T)

    # pick exp at the target class via masked sum (no one-hot materialized);
    # out-of-range labels (incl. the -1 padding) give e_t = 0 -> p_t = 0.
    cidx = jax.lax.broadcasted_iota(jnp.int32, x.shape, 1)
    e_t = jnp.sum(jnp.where(cidx == t, e, 0.0), axis=1, keepdims=True)  # (TB,1,T)

    p_t = e_t / denom                                    # exact div, 1/C of elems
    out_ref[...] = jnp.reshape(jnp.sum(p_t), (1, 1, 1, 1))


def _l1loss_sigmoid_kernel(x_ref, t_ref, out_ref):
    """n_classes == 1 path: per-tile sum of |sigmoid(x) - target|.

    Padded pixels have x == 0 and target == 0.5, so they contribute 0.
    """
    x = x_ref[...].astype(jnp.float32)                   # (TB, 1, T)
    t = t_ref[...].astype(jnp.float32)                   # (TB, 1, T)
    d = jnp.abs(jax.nn.sigmoid(x) - t)
    out_ref[...] = jnp.reshape(jnp.sum(d), (1, 1, 1, 1))


# ---------------------------------------------------------------------------
# Tiling / wrapper
# ---------------------------------------------------------------------------

def _round_up(x, m):
    return (x + m - 1) // m * m


def _choose_tiles(B, C, HW, logit_bytes, label_bytes):
    """Pick (batch_tile, hw_tile, n_hw_tiles, padded_HW).

    Targets ~1 MiB of input per grid step (so per-step DMA dominates the
    ~0.35us fixed step overhead), while keeping the double-buffered footprint
    far below the smallest scoped-VMEM default (v5e: 16 MiB), and keeping at
    least 2 grid steps so both v7x TensorCores get work.
    """
    bytes_per_pixel = C * logit_bytes + label_bytes

    desired = max(128, (_TARGET_STEP_BYTES // bytes_per_pixel) // 128 * 128)
    if HW <= desired:
        tile_hw = _round_up(HW, 128)
        n_tiles = 1
    else:
        tile_hw = desired
        n_tiles = pl.cdiv(HW, tile_hw)
    hw_pad = n_tiles * tile_hw

    per_batch_bytes = tile_hw * bytes_per_pixel
    tb = 1
    for cand in range(B, 0, -1):
        if B % cand:
            continue
        if cand > 1 and cand * per_batch_bytes > _TARGET_STEP_BYTES:
            continue
        if (B // cand) * n_tiles < 2 and B * n_tiles >= 2:
            continue   # would collapse the grid to one step -> idle v7x core
        tb = cand
        break
    return tb, tile_hw, n_tiles, hw_pad


def _run_tiled(kernel, x, t, tb, tile_hw, n_tiles):
    B, C, _ = x.shape
    bg = B // tb
    return pl.pallas_call(
        kernel,
        out_shape=jax.ShapeDtypeStruct((bg, n_tiles, 1, 1), jnp.float32),
        grid_spec=pltpu.PrefetchScalarGridSpec(
            num_scalar_prefetch=0,
            grid=(bg, n_tiles),
            in_specs=[
                pl.BlockSpec((tb, C, tile_hw), lambda b, j: (b, 0, j)),
                pl.BlockSpec((tb, 1, tile_hw), lambda b, j: (b, 0, j)),
            ],
            out_specs=pl.BlockSpec((1, 1, 1, 1), lambda b, j: (b, j, 0, 0)),
        ),
        compiler_params=pltpu.CompilerParams(
            dimension_semantics=("parallel", "parallel"),
        ),
    )(x, t)


def l1_loss_pallas(logits, target, n_classes):
    """logits: (B, C, H, W); target: (B, 1, H, W) class indices (float ok for C==1)."""
    B, C, H, W = logits.shape
    assert C == n_classes
    HW = H * W

    x = logits.reshape(B, C, HW)
    if not jnp.issubdtype(x.dtype, jnp.floating):
        x = x.astype(jnp.float32)

    if n_classes == 1:
        t = target.reshape(B, 1, HW).astype(jnp.float32)
        pad_t_val = 0.5            # |sigmoid(0) - 0.5| == 0  -> padded pixels add 0
        kernel = _l1loss_sigmoid_kernel
    else:
        # TODO(synk): labels could be narrowed to int8 (C <= 127) to shave label DMA
        # bytes; kept int32 here for lowering robustness of the (TB,1,T) label block.
        t = target.reshape(B, 1, HW).astype(jnp.int32)
        pad_t_val = -1             # matches no class -> p_target == 0 for padded pixels
        kernel = _l1loss_softmax_kernel

    tb, tile_hw, n_tiles, hw_pad = _choose_tiles(
        B, C, HW, x.dtype.itemsize, t.dtype.itemsize)

    if hw_pad != HW:
        pad = hw_pad - HW
        x = jnp.pad(x, ((0, 0), (0, 0), (0, pad)))
        t = jnp.pad(t, ((0, 0), (0, 0), (0, pad)), constant_values=pad_t_val)

    partials = _run_tiled(kernel, x, t, tb, tile_hw, n_tiles)
    total = jnp.sum(partials)      # tiny: (B // tb) * n_tiles scalars

    n_pixels = B * HW              # un-padded pixel count
    if n_classes == 1:
        return total / n_pixels
    # per pixel: sum_c |softmax_c - onehot_c| = 2 * (1 - p_target)
    return 2.0 * (n_pixels - total) / (n_pixels * C)


# ---------------------------------------------------------------------------
# Pure-JAX references (mirror the PyTorch forward)
# ---------------------------------------------------------------------------

def l1_loss_ref(logits, target, n_classes):
    B, C, H, W = logits.shape
    if n_classes == 1:
        p = jax.nn.sigmoid(logits.astype(jnp.float32)).reshape(B, 1, -1)
        t = target.reshape(B, 1, -1).astype(jnp.float32)
        return jnp.mean(jnp.abs(p - t))
    p = jax.nn.softmax(logits.astype(jnp.float32), axis=1).reshape(B, C, -1)
    t = target.reshape(B, -1).astype(jnp.int32)
    onehot = jax.nn.one_hot(t, n_classes, axis=1, dtype=jnp.float32)  # (B, C, HW)
    return jnp.mean(jnp.abs(p - onehot))


# ---------------------------------------------------------------------------
# Demo / self-test
# ---------------------------------------------------------------------------

if __name__ == "__main__":
    key = jax.random.PRNGKey(0)
    k1, k2, k3, k4, k5, k6 = jax.random.split(key, 6)

    # multi-class path (softmax + one-hot)
    n_classes = 4
    B, C, H, W = 2, n_classes, 16, 16
    logits = jax.random.normal(k1, (B, C, H, W), dtype=jnp.float32)
    target = jax.random.randint(k2, (B, 1, H, W), 0, n_classes, dtype=jnp.int32)

    loss = l1_loss_pallas(logits, target, n_classes)
    jax.block_until_ready(loss)
    ref = l1_loss_ref(logits, target, n_classes)
    assert jnp.allclose(loss, ref, atol=1e-5, rtol=1e-5), (loss, ref)

    # multi-class path with HW that is NOT a multiple of 128 (exercises padding)
    Hp, Wp = 10, 10
    logits_p = jax.random.normal(k3, (B, C, Hp, Wp), dtype=jnp.float32)
    target_p = jax.random.randint(k4, (B, 1, Hp, Wp), 0, n_classes, dtype=jnp.int32)
    loss_p = l1_loss_pallas(logits_p, target_p, n_classes)
    jax.block_until_ready(loss_p)
    ref_p = l1_loss_ref(logits_p, target_p, n_classes)
    assert jnp.allclose(loss_p, ref_p, atol=1e-5, rtol=1e-5), (loss_p, ref_p)

    # binary path (n_classes == 1, sigmoid)
    logits1 = jax.random.normal(k5, (B, 1, H, W), dtype=jnp.float32)
    target1 = jax.random.randint(k6, (B, 1, H, W), 0, 2, dtype=jnp.int32)
    loss1 = l1_loss_pallas(logits1, target1, 1)
    jax.block_until_ready(loss1)
    ref1 = l1_loss_ref(logits1, target1, 1)
    assert jnp.allclose(loss1, ref1, atol=1e-5, rtol=1e-5), (loss1, ref1)

    print("KERNEL_OK")
</pallas_src>

<mosaic_0001>
module attributes {stable_mosaic.version = 11 : i64} {
  func.func @_l1loss_softmax_kernel(%arg0: i32, %arg1: i32, %arg2: memref<1x4x256xf32, #tpu.memory_space<vmem>>, %arg3: memref<1x1x256xi32, #tpu.memory_space<vmem>>, %arg4: memref<1x1x1x1xf32, #tpu.memory_space<vmem>>) attributes {dimension_semantics = [#tpu.dimension_semantics<parallel>, #tpu.dimension_semantics<parallel>], iteration_bounds = array<i64: 2, 1>, scalar_prefetch = 0 : i64, scratch_operands = 0 : i64, tpu.core_type = #tpu.core_type<tc>, window_params = [{transform_indices = @transform_0, window_bounds = array<i64: 1, 4, 256>}, {transform_indices = @transform_1, window_bounds = array<i64: 1, 1, 256>}, {transform_indices = @transform_2, window_bounds = array<i64: 1, 1, 1, 1>}]} {
    %c0 = arith.constant 0 : index
    %c0_0 = arith.constant 0 : index
    %c0_1 = arith.constant 0 : index
    %0 = vector.load %arg2[%c0, %c0_0, %c0_1] : memref<1x4x256xf32, #tpu.memory_space<vmem>>, vector<1x4x256xf32>
    %c0_2 = arith.constant 0 : index
    %c0_3 = arith.constant 0 : index
    %c0_4 = arith.constant 0 : index
    %1 = vector.load %arg3[%c0_2, %c0_3, %c0_4] : memref<1x1x256xi32, #tpu.memory_space<vmem>>, vector<1x1x256xi32>
    %cst = arith.constant dense<0xFF800000> : vector<1x256xf32>
    %2 = vector.multi_reduction <maximumf>, %0, %cst [1] : vector<1x4x256xf32> to vector<1x256xf32>
    %3 = vector.shape_cast %2 : vector<1x256xf32> to vector<1x1x256xf32>
    %4 = vector.broadcast %3 : vector<1x1x256xf32> to vector<1x4x256xf32>
    %5 = arith.subf %0, %4 : vector<1x4x256xf32>
    %6 = math.exp %5 : vector<1x4x256xf32>
    %cst_5 = arith.constant dense<0.000000e+00> : vector<1x256xf32>
    %7 = vector.multi_reduction <add>, %6, %cst_5 [1] : vector<1x4x256xf32> to vector<1x256xf32>
    %8 = vector.shape_cast %7 : vector<1x256xf32> to vector<1x1x256xf32>
    %9 = tpu.iota {dimensions = array<i32: 1>} : vector<1x4x256xi32>
    %10 = vector.broadcast %1 : vector<1x1x256xi32> to vector<1x4x256xi32>
    %11 = arith.cmpi eq, %9, %10 : vector<1x4x256xi32>
    %cst_6 = arith.constant 0.000000e+00 : f32
    %12 = vector.broadcast %cst_6 : f32 to vector<1x4x256xf32>
    %13 = arith.select %11, %6, %12 : vector<1x4x256xi1>, vector<1x4x256xf32>
    %cst_7 = arith.constant dense<0.000000e+00> : vector<1x256xf32>
    %14 = vector.multi_reduction <add>, %13, %cst_7 [1] : vector<1x4x256xf32> to vector<1x256xf32>
    %15 = vector.shape_cast %14 : vector<1x256xf32> to vector<1x1x256xf32>
    %16 = arith.divf %15, %8 : vector<1x1x256xf32>
    %17 = vector.shape_cast %16 : vector<1x1x256xf32> to vector<1x1x1x256xf32>
    %cst_8 = arith.constant dense<0.000000e+00> : vector<1xf32>
    %18 = vector.multi_reduction <add>, %17, %cst_8 [1, 2, 3] : vector<1x1x1x256xf32> to vector<1xf32>
    %19 = vector.shape_cast %18 : vector<1xf32> to vector<1x1x1x1xf32>
    %20 = vector.extract %19[0, 0, 0, 0] : f32 from vector<1x1x1x1xf32>
    %21 = vector.broadcast %20 : f32 to vector<1x1x1x1xf32>
    %c0_9 = arith.constant 0 : index
    %c0_10 = arith.constant 0 : index
    %c0_11 = arith.constant 0 : index
    %c0_12 = arith.constant 0 : index
    %22 = vector.load %arg4[%c0_9, %c0_10, %c0_11, %c0_12] : memref<1x1x1x1xf32, #tpu.memory_space<vmem>>, vector<1x1x1x1xf32>
    tpu.vector_store %arg4[%c0_9, %c0_10, %c0_11, %c0_12], %21 {strides = array<i32>} : memref<1x1x1x1xf32, #tpu.memory_space<vmem>>, vector<1x1x1x1xf32>,
    return
  }
  func.func @transform_0(%arg0: i32, %arg1: i32) -> (i32, i32, i32) {
    %c0_i32 = arith.constant 0 : i32
    %c0_i32_0 = arith.constant 0 : i32
    return %arg0, %c0_i32, %arg1 : i32, i32, i32
  }
  func.func @transform_1(%arg0: i32, %arg1: i32) -> (i32, i32, i32) {
    %c0_i32 = arith.constant 0 : i32
    %c0_i32_0 = arith.constant 0 : i32
    return %arg0, %c0_i32, %arg1 : i32, i32, i32
  }
  func.func @transform_2(%arg0: i32, %arg1: i32) -> (i32, i32, i32, i32) {
    %c0_i32 = arith.constant 0 : i32
    %c0_i32_0 = arith.constant 0 : i32
    %c0_i32_1 = arith.constant 0 : i32
    return %arg0, %arg1, %c0_i32, %c0_i32_0 : i32, i32, i32, i32
  }
}

</mosaic_0001>

<llo_original>
// kernel: tpu_custom_call.1
$region0: #{tpu_custom_call.1}
  #allocation0 [shape = 'u32[]', space=smem, size = 0x4, offset = 0x4, fixed_abs, tag = 'smem constant byte address 0x4 - core index']
  #allocation1 [shape = 'u32[144,128]{1,0:T(1,128)}', space=vmem, size = 0x12000, scoped, tag = 'internal scratch']
  %s0 = inlined_call_operand.hbm [shape: f32[2,4,256], index: 0, kind: input, shape index: {}]
  %s1 = inlined_call_operand.hbm [shape: s32[2,1,256], index: 1, kind: input, shape index: {}]
  %s2 = inlined_call_operand.vmem [shape: f32[2,1,1,1], index: 2, kind: output, shape index: {}]
  %s3 = sld [smem:[#allocation0]]
  $region49: #{tpu_custom_call.1} parent=0
    _
  %s5 = ssub.s32 1, %s3
  %s6 = scalar_select 0, %s5, %s3
  $region1: #{tpu_custom_call.1} parent=0
    #allocation2 [shape = 'u8[8192]{0}', space=vmem, size = 0x2000, scoped, tag = 'input window, operand 0']
    #allocation3 [shape = 's32[2]{0}', space=sflag, size = 0x8, scoped, tag = 'scoped memory for tpu_custom_call.1']
    #allocation4 [shape = 'u8[2048]{0}', space=vmem, size = 0x800, scoped, tag = 'input window, operand 1']
    #allocation5 [shape = 's32[2]{0}', space=sflag, size = 0x8, scoped, tag = 'scoped memory for tpu_custom_call.1']
    %7 = vsyncpa [#allocation3], 0
    %s8 = scalar_lea.sflag [#allocation3], 1
    %9 = vsyncpa %s8, 0
    %10 = vsyncpa [#allocation5], 0
    %s11 = scalar_lea.sflag [#allocation5], 1
    %12 = vsyncpa %s11, 0
    loop: start=0, step=1, limit=4
    $region2: #{tpu_custom_call.1} parent=1 // loop_pre_header
      _
    $region3: #{tpu_custom_call.1} parent=1 // loop_header
      %s14 = sphi 0, %s18
      %p15 = scmp.ge.s32.totalorder %s14, 4
      %s21 = sphi 0, %s33
      %s22 = sphi 0, %s29
      %s23 = sphi 0, %s21
      %s24 = sphi 0, %s22
      %s25 = sphi 0, %s23
      %s26 = sphi 0, %s24
      %s38 = sphi 0, %s40
      %s41 = sphi 0, %s38
      %s42 = sphi 0, %s41
      %s58 = sphi 0, %s42
      %s66 = sphi 0, %s68
      %s69 = sphi 0, %s66
      %s70 = sphi 0, %s69
      %s86 = sphi 0, %s70
      %s94 = sphi 0, %s96
      %s97 = sphi 0, %s94
      %s98 = sphi 0, %s97
      %s114 = sphi 0, %s98
    $region4: #{tpu_custom_call.1} parent=1 // loop_header_branch
      %17 = sbr.rel (%p15) target = $region8
    $region5: #{tpu_custom_call.1} parent=1 // loop_body
      %s19 = ssub.s32 %s14, 1
      %s20 = ssub.s32 %s14, 2
      %s27 = sadd.s32 1, %s22
      %p28 = scmp.ge.s32.totalorder %s27, 1
      %s29 = scalar_select %p28, 0, %s27
      %s30 = sadd.s32 1, %s21
      %s31 = scalar_select %p28, %s30, %s21
      %p32 = scmp.ge.s32.totalorder %s31, 2
      %s33 = scalar_select %p32, 0, %s31
      %s34 = ssub.s32 %s21, %s33
      %s35 = ssub.s32 %s22, %s29
      %s36 = sor.u32 %s34, %s35
      %p37 = scmp.eq.s32.totalorder %s36, 0
      %s39 = sadd.s32 %s38, 1
      %s40 = scalar_select %p37, %s38, %s39
      %p43 = pneg %p37
      %p44 = scmp.eq.s32.totalorder %s14, 1
      %p45 = por %p43, %p44
      %p46 = scmp.ne.s32.totalorder %s38, %s41
      %p47 = scmp.eq.s32.totalorder %s14, 0
      %p48 = por %p46, %p47
      %p49 = scmp.ne.s32.totalorder %s38, %s41
      %p50 = scmp.eq.s32.totalorder %s19, 1
      %p51 = por %p49, %p50
      %p52 = scmp.ne.s32.totalorder %s41, %s42
      %p53 = scmp.eq.s32.totalorder %s19, 0
      %p54 = por %p52, %p53
      %p55 = scmp.ne.s32.totalorder %s41, %s42
      %p56 = scmp.eq.s32.totalorder %s20, 1
      %p57 = por %p55, %p56
      %p59 = scmp.ne.s32.totalorder %s42, %s58
      %p60 = scmp.eq.s32.totalorder %s20, 0
      %p61 = por %p59, %p60
      %s62 = ssub.s32 %s21, %s33
      %s63 = ssub.s32 %s22, %s29
      %s64 = sor.u32 %s62, %s63
      %p65 = scmp.eq.s32.totalorder %s64, 0
      %s67 = sadd.s32 %s66, 1
      %s68 = scalar_select %p65, %s66, %s67
      %p71 = pneg %p65
      %p72 = scmp.eq.s32.totalorder %s14, 1
      %p73 = por %p71, %p72
      %p74 = scmp.ne.s32.totalorder %s66, %s69
      %p75 = scmp.eq.s32.totalorder %s14, 0
      %p76 = por %p74, %p75
      %p77 = scmp.ne.s32.totalorder %s66, %s69
      %p78 = scmp.eq.s32.totalorder %s19, 1
      %p79 = por %p77, %p78
      %p80 = scmp.ne.s32.totalorder %s69, %s70
      %p81 = scmp.eq.s32.totalorder %s19, 0
      %p82 = por %p80, %p81
      %p83 = scmp.ne.s32.totalorder %s69, %s70
      %p84 = scmp.eq.s32.totalorder %s20, 1
      %p85 = por %p83, %p84
      %p87 = scmp.ne.s32.totalorder %s70, %s86
      %p88 = scmp.eq.s32.totalorder %s20, 0
      %p89 = por %p87, %p88
      %s90 = ssub.s32 %s21, %s33
      %s91 = ssub.s32 %s22, %s29
      %s92 = sor.u32 %s90, %s91
      %p93 = scmp.eq.s32.totalorder %s92, 0
      %s95 = sadd.s32 %s94, 1
      %s96 = scalar_select %p93, %s94, %s95
      %p99 = pneg %p93
      %p100 = scmp.eq.s32.totalorder %s14, 1
      %p101 = por %p99, %p100
      %p102 = scmp.ne.s32.totalorder %s94, %s97
      %p103 = scmp.eq.s32.totalorder %s14, 0
      %p104 = por %p102, %p103
      %p105 = scmp.ne.s32.totalorder %s94, %s97
      %p106 = scmp.eq.s32.totalorder %s19, 1
      %p107 = por %p105, %p106
      %p108 = scmp.ne.s32.totalorder %s97, %s98
      %p109 = scmp.eq.s32.totalorder %s19, 0
      %p110 = por %p108, %p109
      %p111 = scmp.ne.s32.totalorder %s97, %s98
      %p112 = scmp.eq.s32.totalorder %s20, 1
      %p113 = por %p111, %p112
      %p115 = scmp.ne.s32.totalorder %s98, %s114
      %p116 = scmp.eq.s32.totalorder %s20, 0
      %p117 = por %p115, %p116
      %p118 = scmp.le.s32.totalorder 1, %s14
      %p119 = scmp.lt.s32.totalorder %s14, 3
      %p120 = pnand %p118, %p119
      %p121 = pneg %p120
      // Predicated region
      $region9: #{tpu_custom_call.1} parent=5 // pred_check
        _
      $region10: #{tpu_custom_call.1} parent=5 // pred_check_branch
        %123 = sbr.rel (%p120) target = $region12
      $region11: #{tpu_custom_call.1} parent=5 // pred_region
        %s124 = ssub.s32 %s14, 1
      $region12: #{tpu_custom_call.1} parent=5 // pred_fallthru
        _
      %p125 = scmp.lt.s32.totalorder %s14, 2
      // Predicated region
      $region13: #{tpu_custom_call.1} parent=5 // pred_check
        %p126 = pneg %p125
      $region14: #{tpu_custom_call.1} parent=5 // pred_check_branch
        %128 = sbr.rel (%p126) target = $region16
      $region15: #{tpu_custom_call.1} parent=5 // pred_region
        // Predicated region
        $region17: #{tpu_custom_call.1} parent=15 // pred_check
          %p129 = pneg %p48
        $region18: #{tpu_custom_call.1} parent=15 // pred_check_branch
          %131 = sbr.rel (%p129) target = $region20
        $region19: #{tpu_custom_call.1} parent=15 // pred_region
          %s132 = sand.u32 %s38, 1
          %s133 = scalar_lea.sflag [#allocation3], %s132
          %s134 = sand.u32 %s38, 1
          %s135 = smul.addr %s134, 8
          %s136 = scalar_lea.vmem [#allocation2], %s135
          %s137 = smul.u32 2, %s22
          %s139 = ssub.s32 128, 128
          %140 = vsyncadd %s133, %s139
          %s141 = smul.addr %s21, 2
          %s142 = sadd.s32 %s137, %s141
          %s143 = smul.addr %s142, 64
          %s144 = scalar_lea.hbm %s0, %s143
          %s146 = sshll.u32 %s136, 4
          %s147 = int_to_ptr.vmem [resolvable:$true] %s146
          %149 = dma.hbm_to_vmem [thread:$0]  %s144, 128, %s147, %s133
        $region20: #{tpu_custom_call.1} parent=15 // pred_fallthru
          _
        // Predicated region
        $region21: #{tpu_custom_call.1} parent=15 // pred_check
          %p150 = pneg %p76
        $region22: #{tpu_custom_call.1} parent=15 // pred_check_branch
          %152 = sbr.rel (%p150) target = $region24
        $region23: #{tpu_custom_call.1} parent=15 // pred_region
          %s153 = sand.u32 %s66, 1
          %s154 = scalar_lea.sflag [#allocation5], %s153
          %s155 = sand.u32 %s66, 1
          %s156 = smul.addr %s155, 2
          %s157 = scalar_lea.vmem [#allocation4], %s156
          %s158 = smul.u32 2, %s22
          %s160 = ssub.s32 32, 32
          %161 = vsyncadd %s154, %s160
          %s162 = smul.addr %s21, 2
          %s163 = sadd.s32 %s158, %s162
          %s164 = smul.addr %s163, 16
          %s165 = scalar_lea.hbm %s1, %s164
          %s167 = sshll.u32 %s157, 4
          %s168 = int_to_ptr.vmem [resolvable:$true] %s167
          %170 = dma.hbm_to_vmem [thread:$0]  %s165, 32, %s168, %s154
        $region24: #{tpu_custom_call.1} parent=15 // pred_fallthru
          _
      $region16: #{tpu_custom_call.1} parent=5 // pred_fallthru
        _
      %p171 = scmp.le.s32.totalorder 1, %s14
      %p172 = scmp.lt.s32.totalorder %s14, 3
      %p173 = pnand %p171, %p172
      %p174 = pneg %p173
      // Predicated region
      $region25: #{tpu_custom_call.1} parent=5 // pred_check
        _
      $region26: #{tpu_custom_call.1} parent=5 // pred_check_branch
        %176 = sbr.rel (%p173) target = $region28
      $region27: #{tpu_custom_call.1} parent=5 // pred_region
        %s177 = ssub.s32 %s14, 1
        %s178 = sand.u32 %s41, 1
        %s179 = scalar_lea.sflag [#allocation3], %s178
        %s180 = sand.u32 %s41, 1
        %s181 = smul.addr %s180, 8
        %s182 = scalar_lea.vmem [#allocation2], %s181
        // Predicated region
        $region29: #{tpu_custom_call.1} parent=27 // pred_check
          %p183 = pneg %p54
        $region30: #{tpu_custom_call.1} parent=27 // pred_check_branch
          %185 = sbr.rel (%p183) target = $region32
        $region31: #{tpu_custom_call.1} parent=27 // pred_region
          %186 = dma.done %s179, 128
        $region32: #{tpu_custom_call.1} parent=27 // pred_fallthru
          _
        %s187 = sand.u32 %s69, 1
        %s188 = scalar_lea.sflag [#allocation5], %s187
        %s189 = sand.u32 %s69, 1
        %s190 = smul.addr %s189, 2
        %s191 = scalar_lea.vmem [#allocation4], %s190
        // Predicated region
        $region33: #{tpu_custom_call.1} parent=27 // pred_check
          %p192 = pneg %p82
        $region34: #{tpu_custom_call.1} parent=27 // pred_check_branch
          %194 = sbr.rel (%p192) target = $region36
        $region35: #{tpu_custom_call.1} parent=27 // pred_region
          %195 = dma.done %s188, 32
        $region36: #{tpu_custom_call.1} parent=27 // pred_fallthru
          _
        %s196 = sand.u32 %s41, 1
        %s197 = scalar_lea.sflag [#allocation3], %s196
        %s198 = sand.u32 %s41, 1
        %s199 = smul.addr %s198, 8
        %s200 = scalar_lea.vmem [#allocation2], %s199
        %p201 = pneg %p54
        %p202 = pneg %p51
        %s203 = sand.u32 %s69, 1
        %s204 = scalar_lea.sflag [#allocation5], %s203
        %s205 = sand.u32 %s69, 1
        %s206 = smul.addr %s205, 2
        %s207 = scalar_lea.vmem [#allocation4], %s206
        %p208 = pneg %p82
        %p209 = pneg %p79
        %p210 = pneg %p110
        %p211 = pneg %p107
        %p212 = scmp.lt.s32.totalorder %s23, 1
        %s213 = scalar_select %p212, %s23, 1
        %p214 = scmp.lt.s32.totalorder %s24, 0
        %s215 = scalar_select %p214, %s24, 0
        %s216 = sadd.s32 %s215, %s213
        %s217 = scalar_lea.vmem %s2, %s216
        %s218 = smul.u32 2, %s24
        %s219 = smul.u32 2, %s24
        %p220 = scmp.lt.s32.totalorder %s23, 1
        %s221 = scalar_select %p220, %s23, 1
        %p222 = scmp.lt.s32.totalorder %s24, 0
        %s223 = scalar_select %p222, %s24, 0
        %s224 = sadd.s32 %s223, %s221
        %s225 = scalar_lea.vmem %s2, %s224
        %v226 = vld [vmem:[%s182] sm:$0xff]
        %v227 = vld [vmem:[%s191] sm:$0x3]
        %v229 = vcombine.high %v226, %v226
        %vm231 = vcmask 1043456
        %v232 = vsel %vm231, %v226, -inf
        %v233 = vrot.slane %v232, 4
        %v234 = vmax.f32 %v232, %v233
        %v235 = vrot.slane %v234, 2
        %v236 = vmax.f32 %v234, %v235
        %v237 = vrot.slane %v236, 1
        %v238 = vmax.f32 %v236, %v237
        %v239 = vsel %vm231, %v229, -inf
        %v240 = vrot.slane %v239, 4
        %v241 = vmax.f32 %v239, %v240
        %v242 = vrot.slane %v241, 2
        %v243 = vmax.f32 %v241, %v242
        %v244 = vrot.slane %v243, 1
        %v245 = vmax.f32 %v243, %v244
        %v248 = vcombine.low %v238, %v245
        %v250 = vsub.f32 %v226, %v248
        %v251 = vmul.f32 %v250, 1.442695
        %v252 = vpow.pop %v251
        %v254 = vcombine.high %v252, %v252
        %v256 = vsel %vm231, %v252, 0.0
        %v257 = vrot.slane %v256, 4
        %v258 = vadd.f32 %v256, %v257
        %v259 = vrot.slane %v258, 2
        %v260 = vadd.f32 %v258, %v259
        %v261 = vrot.slane %v260, 1
        %v262 = vadd.f32 %v260, %v261
        %v263 = vsel %vm231, %v254, 0.0
        %v264 = vrot.slane %v263, 4
        %v265 = vadd.f32 %v263, %v264
        %v266 = vrot.slane %v265, 2
        %v267 = vadd.f32 %v265, %v266
        %v268 = vrot.slane %v267, 1
        %v269 = vadd.f32 %v267, %v268
        %v270 = vlaneseq
        %v271 = vshrl.u32 %v270, 7
        %v272 = vlaneseq
        %v273 = vshrl.u32 %v272, 7
        %v274 = vsub.s32 0, %v273
        %v275 = vrot.slane %v227, %v274
        %v276 = vlaneseq
        %v277 = vshrl.u32 %v276, 7
        %v278 = vsub.s32 1, %v277
        %v279 = vrot.slane %v227, %v278
        %vm280 = vcmp.eq.s32.totalorder %v271, %v275
        %vm281 = vcmp.eq.s32.totalorder %v271, %v279
        %v282 = vsel %vm280, %v252, 0.0
        %v283 = vsel %vm281, %v254, 0.0
        %v284 = vsel %vm231, %v282, 0.0
        %v285 = vrot.slane %v284, 4
        %v286 = vadd.f32 %v284, %v285
        %v287 = vrot.slane %v286, 2
        %v288 = vadd.f32 %v286, %v287
        %v289 = vrot.slane %v288, 1
        %v290 = vadd.f32 %v288, %v289
        %v291 = vsel %vm231, %v283, 0.0
        %v292 = vrot.slane %v291, 4
        %v293 = vadd.f32 %v291, %v292
        %v294 = vrot.slane %v293, 2
        %v295 = vadd.f32 %v293, %v294
        %v296 = vrot.slane %v295, 1
        %v297 = vadd.f32 %v295, %v296
        %v298 = vrcp.pop %v262
        %v299 = vmul.f32 %v290, %v298
        %v300 = vrcp.pop %v269
        %v301 = vmul.f32 %v297, %v300
        %vm302 = vcmask 1040384
        %v303 = vsel %vm302, %v299, 0.0
        %v304 = vsel %vm302, %v301, 0.0
        %v305 = vadd.f32 %v303, %v304
        %306 = vadd.xlane.f32.xlu0 %v305
        %v307 = vpop.xlane.xlu0 %306
        %v308 = vrot.slane %v307, 4
        %v309 = vadd.f32 %v307, %v308
        %v310 = vrot.slane %v309, 2
        %v311 = vadd.f32 %v309, %v310
        %v312 = vrot.slane %v311, 1
        %v313 = vadd.f32 %v311, %v312
        %s314 = vtos %v313
        %v315 = vstv %s314
        %vm316 = vcmask 0
        %317 = vst.msk [vmem:[%s225] sm:$0x1] %vm316, %v315
        %p318 = scmp.lt.s32.totalorder %s23, 1
        %s319 = scalar_select %p318, %s23, 1
        %p320 = scmp.lt.s32.totalorder %s24, 0
        %s321 = scalar_select %p320, %s24, 0
        %s322 = sadd.s32 %s321, %s319
        %s323 = scalar_lea.vmem %s2, %s322
        // Predicated region
        $region37: #{tpu_custom_call.1} parent=27 // pred_check
          %p324 = pneg %p107
        $region38: #{tpu_custom_call.1} parent=27 // pred_check_branch
          %326 = sbr.rel (%p324) target = $region40
        $region39: #{tpu_custom_call.1} parent=27 // pred_region
          _
        $region40: #{tpu_custom_call.1} parent=27 // pred_fallthru
          _
      $region28: #{tpu_custom_call.1} parent=5 // pred_fallthru
        _
      %p327 = scmp.le.s32.totalorder 2, %s14
      // Predicated region
      $region41: #{tpu_custom_call.1} parent=5 // pred_check
        %p328 = pneg %p327
      $region42: #{tpu_custom_call.1} parent=5 // pred_check_branch
        %330 = sbr.rel (%p328) target = $region44
      $region43: #{tpu_custom_call.1} parent=5 // pred_region
        %s331 = ssub.s32 %s14, 2
        // Predicated region
        $region45: #{tpu_custom_call.1} parent=43 // pred_check
          %p332 = pneg %p113
        $region46: #{tpu_custom_call.1} parent=43 // pred_check_branch
          %334 = sbr.rel (%p332) target = $region48
        $region47: #{tpu_custom_call.1} parent=43 // pred_region
          %p335 = scmp.lt.s32.totalorder %s25, 1
          %s336 = scalar_select %p335, %s25, 1
          %p337 = scmp.lt.s32.totalorder %s26, 0
          %s338 = scalar_select %p337, %s26, 0
          %s339 = sadd.s32 %s338, %s336
          %s340 = scalar_lea.vmem %s2, %s339
        $region48: #{tpu_custom_call.1} parent=43 // pred_fallthru
          _
      $region44: #{tpu_custom_call.1} parent=5 // pred_fallthru
        _
    $region6: #{tpu_custom_call.1} parent=1 // loop_footer
      %s18 = sadd.s32 1, %s14
    $region7: #{tpu_custom_call.1} parent=1 // loop_footer_branch
      %13 = sbr.rel target = $region3
    $region8: #{tpu_custom_call.1} parent=1 // loop_exit
      _
    %341 = vsyncpa [#allocation3], 1
    %s342 = scalar_lea.sflag [#allocation3], 1
    %343 = vsyncpa %s342, 1
    %344 = vsyncpa [#allocation5], 1
    %s345 = scalar_lea.sflag [#allocation5], 1
    %346 = vsyncpa %s345, 1

</llo_original>
